<compile_context>
chip_gen: v6e
topology: v6e:2x2x1
jax: 0.10.0
libtpu: 0.0.40
codegen_flags: <defaults>
</compile_context>

<pallas_src>
import jax
import jax.numpy as jnp
from jax.experimental import pallas as pl
from jax.experimental.pallas import tpu as pltpu

NUM_BITS = 8
NUM_BINS = float(2 ** NUM_BITS - 1)      # 255.0
EPS = 1e-8

TILE_BYTES = 4 * 1024 * 1024             # two-pass path: ~4 MiB tiles
FUSED_MAX_SLAB_BYTES = 4 * 1024 * 1024   # fused path: whole slab resident in VMEM
VMEM_LIMIT = 32 * 1024 * 1024            # explicit scoped-VMEM limit (v5e..v7x safe)

_MIN_SUBLANES = {4: 8, 2: 16, 1: 32}     # packed-sublane minimum per itemsize


def _round_up(a, b):
    return (a + b - 1) // b * b


# --------- fused single-block kernel (small slabs, resident in VMEM) ---------
def _fused_kernel(x_ref, o_ref):
    x = x_ref[...].astype(jnp.float32)
    zero_point = jnp.min(x) - EPS
    mx = jnp.max(x) + EPS
    rng = mx - zero_point
    scale = NUM_BINS / rng
    step = rng / NUM_BINS                # == 1/scale; avoids per-element divide
    q = jnp.round(jnp.clip((x - zero_point) * scale, 0.0, NUM_BINS))
    o_ref[...] = (q * step + zero_point).astype(o_ref.dtype)


# ---------------- pass 1: global min / max (elementwise accumulate) ----------
def _make_minmax_kernel(row_tile, lane, rows_total):
    need_mask = (rows_total % row_tile) != 0   # static at trace time

    def kernel(x_ref, mn_ref, mx_ref, mn_acc, mx_acc):
        i = pl.program_id(0)

        @pl.when(i == 0)
        def _():
            mn_acc[...] = jnp.full_like(mn_acc, jnp.inf)
            mx_acc[...] = jnp.full_like(mx_acc, -jnp.inf)

        x = x_ref[...].astype(jnp.float32)
        if need_mask:
            # Partial last tile: rows beyond the array hold unspecified data.
            valid = rows_total - i * row_tile
            row_ids = jax.lax.broadcasted_iota(jnp.int32, (row_tile, lane), 0)
            in_bounds = row_ids < valid
            x_mn = jnp.where(in_bounds, x, jnp.inf)
            x_mx = jnp.where(in_bounds, x, -jnp.inf)
        else:
            x_mn = x
            x_mx = x

        # Fold each tile down to (8, lane) with pure-VPU elementwise min/max
        # (sublane-group split is a layout no-op); the only cross-lane reduce
        # happens once, in the last-iteration epilogue, on 8*lane elements.
        mn_acc[...] = jnp.minimum(
            mn_acc[...], jnp.min(x_mn.reshape(-1, 8, lane), axis=0))
        mx_acc[...] = jnp.maximum(
            mx_acc[...], jnp.max(x_mx.reshape(-1, 8, lane), axis=0))

        @pl.when(i == pl.num_programs(0) - 1)
        def _():
            mn_ref[...] = jnp.full((1, 1), jnp.min(mn_acc[...]), dtype=jnp.float32)
            mx_ref[...] = jnp.full((1, 1), jnp.max(mx_acc[...]), dtype=jnp.float32)

    return kernel


# --------------------------- pass 2: quantize ---------------------------------
def _quantize_kernel(params_ref, x_ref, o_ref):
    # params (SMEM, f32): [zero_point, scale, step]
    zero_point = params_ref[0]
    scale = params_ref[1]
    step = params_ref[2]
    x = x_ref[...].astype(jnp.float32)
    q = jnp.round(jnp.clip((x - zero_point) * scale, 0.0, NUM_BINS))
    o_ref[...] = (q * step + zero_point).astype(o_ref.dtype)


def quant_measure(x):
    """Pallas implementation of QuantMeasure.forward (any shape, e.g. NCHW)."""
    orig_shape = x.shape
    orig_dtype = x.dtype
    total = x.size
    itemsize = jnp.dtype(orig_dtype).itemsize
    sub = _MIN_SUBLANES.get(itemsize, 8)

    flat = x.reshape(-1)

    # Pick a lane width that makes flat -> (rows, lane) a free bitcast reshape.
    lane = next((c for c in (512, 256, 128) if total % c == 0), None)
    if lane is None:
        # Ragged tail: bounded (< 512 element) edge-replicated pad.  Padded
        # values duplicate real elements, so global min/max are unchanged.
        # TODO(synk): replace with an in-kernel masked tail store to also drop
        #             the pad + final-slice copies for ragged sizes.
        lane = 512
        padded_total = _round_up(total, lane)
        flat = jnp.pad(flat, (0, padded_total - total), mode="edge")
    else:
        padded_total = total

    rows = padded_total // lane
    x2 = flat.reshape(rows, lane)

    if padded_total * itemsize <= FUSED_MAX_SLAB_BYTES:
        # Whole slab resident in VMEM: one launch, 1 HBM read + 1 HBM write.
        out2 = pl.pallas_call(
            _fused_kernel,
            out_shape=jax.ShapeDtypeStruct((rows, lane), orig_dtype),
            compiler_params=pltpu.CompilerParams(vmem_limit_bytes=VMEM_LIMIT),
        )(x2)
    else:
        row_tile = max(sub, (TILE_BYTES // (lane * itemsize)) // sub * sub)
        grid = (pl.cdiv(rows, row_tile),)

        # Pass 1: global min / max (sequential reduction, small accumulators).
        mn, mx = pl.pallas_call(
            _make_minmax_kernel(row_tile, lane, rows),
            out_shape=(jax.ShapeDtypeStruct((1, 1), jnp.float32),
                       jax.ShapeDtypeStruct((1, 1), jnp.float32)),
            grid_spec=pltpu.PrefetchScalarGridSpec(
                num_scalar_prefetch=0,
                grid=grid,
                in_specs=[pl.BlockSpec((row_tile, lane), lambda i: (i, 0))],
                out_specs=[pl.BlockSpec((1, 1), lambda i: (0, 0)),
                           pl.BlockSpec((1, 1), lambda i: (0, 0))],
                scratch_shapes=[pltpu.VMEM((8, lane), jnp.float32),
                                pltpu.VMEM((8, lane), jnp.float32)]),
            compiler_params=pltpu.CompilerParams(
                dimension_semantics=("arbitrary",),
                vmem_limit_bytes=VMEM_LIMIT),
        )(x2)

        # Scalar quantization parameters (a handful of tiny XLA ops), delivered
        # to pass 2 through SMEM.
        zero_point = mn[0, 0] - EPS
        mx_adj = mx[0, 0] + EPS
        rng = mx_adj - zero_point
        params = jnp.stack(
            [zero_point, NUM_BINS / rng, rng / NUM_BINS]).astype(jnp.float32)

        # Pass 2: elementwise fake-quantize.  Out-of-bounds writes of the
        # partial last tile are discarded by Pallas; grid is "parallel" so both
        # v7x TensorCores can participate.
        out2 = pl.pallas_call(
            _quantize_kernel,
            out_shape=jax.ShapeDtypeStruct((rows, lane), orig_dtype),
            grid_spec=pltpu.PrefetchScalarGridSpec(
                num_scalar_prefetch=0,
                grid=grid,
                in_specs=[pl.BlockSpec(memory_space=pltpu.MemorySpace.SMEM),
                          pl.BlockSpec((row_tile, lane), lambda i: (i, 0))],
                out_specs=pl.BlockSpec((row_tile, lane), lambda i: (i, 0))),
            compiler_params=pltpu.CompilerParams(
                dimension_semantics=("parallel",),
                vmem_limit_bytes=VMEM_LIMIT),
        )(params, x2)

    if padded_total != total:
        return out2.reshape(-1)[:total].reshape(orig_shape)
    return out2.reshape(orig_shape)


def _reference(x):
    """Pure-JAX reference mirroring the PyTorch forward."""
    xf = x.astype(jnp.float32)
    zero_point = jnp.min(xf) - EPS
    mx = jnp.max(xf) + EPS
    scale = NUM_BINS / (mx - zero_point)
    q = jnp.round(jnp.clip((xf - zero_point) * scale, 0.0, NUM_BINS))
    return (q / scale + zero_point).astype(x.dtype)


if __name__ == "__main__":
    key = jax.random.PRNGKey(0)

    # (2,4,16,16):  small NCHW activation -> fused path, free reshape.
    # (2,3,14,14):  ragged element count   -> fused path, bounded pad.
    # (8,64,56,56): larger activation      -> two-pass path with a partial
    #               (iota-masked) last tile in pass 1.
    shapes = [(2, 4, 16, 16), (2, 3, 14, 14), (8, 64, 56, 56)]
    keys = jax.random.split(key, len(shapes))

    for k, shp in zip(keys, shapes):
        x = jax.random.normal(k, shp, dtype=jnp.float32)
        out = jax.block_until_ready(quant_measure(x))
        ref = jax.block_until_ready(_reference(x))
        assert out.shape == x.shape and out.dtype == x.dtype
        assert jnp.allclose(out, ref, atol=1e-5, rtol=1e-5), f"mismatch at {shp}"

    print("KERNEL_OK")
</pallas_src>

<mosaic_0001>
module attributes {stable_mosaic.version = 11 : i64} {
  func.func @_fused_kernel(%arg0: memref<4x512xf32, #tpu.memory_space<vmem>>, %arg1: memref<4x512xf32, #tpu.memory_space<vmem>>) attributes {dimension_semantics = [], scalar_prefetch = 0 : i64, scratch_operands = 0 : i64, tpu.core_type = #tpu.core_type<tc>} {
    %c0 = arith.constant 0 : index
    %c0_0 = arith.constant 0 : index
    %0 = vector.load %arg0[%c0, %c0_0] : memref<4x512xf32, #tpu.memory_space<vmem>>, vector<4x512xf32>
    %1 = vector.shape_cast %0 : vector<4x512xf32> to vector<1x4x512xf32>
    %cst = arith.constant dense<0x7F800000> : vector<1xf32>
    %2 = vector.multi_reduction <minimumf>, %1, %cst [1, 2] : vector<1x4x512xf32> to vector<1xf32>
    %3 = vector.shape_cast %2 : vector<1xf32> to vector<1x1x1xf32>
    %4 = vector.extract %3[0, 0, 0] : f32 from vector<1x1x1xf32>
    %cst_1 = arith.constant 9.99999993E-9 : f32
    %5 = arith.subf %4, %cst_1 : f32
    %6 = vector.shape_cast %0 : vector<4x512xf32> to vector<1x4x512xf32>
    %cst_2 = arith.constant dense<0xFF800000> : vector<1xf32>
    %7 = vector.multi_reduction <maximumf>, %6, %cst_2 [1, 2] : vector<1x4x512xf32> to vector<1xf32>
    %8 = vector.shape_cast %7 : vector<1xf32> to vector<1x1x1xf32>
    %9 = vector.extract %8[0, 0, 0] : f32 from vector<1x1x1xf32>
    %cst_3 = arith.constant 9.99999993E-9 : f32
    %10 = arith.addf %9, %cst_3 : f32
    %11 = arith.subf %10, %5 : f32
    %cst_4 = arith.constant 2.550000e+02 : f32
    %12 = arith.divf %cst_4, %11 : f32
    %cst_5 = arith.constant 2.550000e+02 : f32
    %13 = arith.divf %11, %cst_5 : f32
    %14 = vector.broadcast %5 : f32 to vector<4x512xf32>
    %15 = arith.subf %0, %14 : vector<4x512xf32>
    %16 = vector.broadcast %12 : f32 to vector<4x512xf32>
    %17 = arith.mulf %15, %16 : vector<4x512xf32>
    %cst_6 = arith.constant 0.000000e+00 : f32
    %cst_7 = arith.constant 2.550000e+02 : f32
    %18 = vector.broadcast %cst_6 : f32 to vector<4x512xf32>
    %19 = arith.maximumf %18, %17 : vector<4x512xf32>
    %20 = vector.broadcast %cst_7 : f32 to vector<4x512xf32>
    %21 = arith.minimumf %20, %19 : vector<4x512xf32>
    %22 = math.roundeven %21 : vector<4x512xf32>
    %23 = vector.broadcast %13 : f32 to vector<4x512xf32>
    %24 = arith.mulf %22, %23 : vector<4x512xf32>
    %25 = vector.broadcast %5 : f32 to vector<4x512xf32>
    %26 = arith.addf %24, %25 : vector<4x512xf32>
    %c0_8 = arith.constant 0 : index
    %c0_9 = arith.constant 0 : index
    %27 = vector.load %arg1[%c0_8, %c0_9] : memref<4x512xf32, #tpu.memory_space<vmem>>, vector<4x512xf32>
    tpu.vector_store %arg1[%c0_8, %c0_9], %26 {strides = array<i32>} : memref<4x512xf32, #tpu.memory_space<vmem>>, vector<4x512xf32>,
    return
  }
}

</mosaic_0001>

<llo_original>
// kernel: tpu_custom_call.1
$region0: #{tpu_custom_call.1}
  #allocation0 [shape = 'u32[]', space=smem, size = 0x4, offset = 0x4, fixed_abs, tag = 'smem constant byte address 0x4 - core index']
  #allocation1 [shape = 'u32[144,128]{1,0:T(1,128)}', space=vmem, size = 0x12000, scoped, tag = 'internal scratch']
  %s0 = inlined_call_operand.hbm [shape: f32[4,512], index: 0, kind: input, shape index: {}]
  %s1 = inlined_call_operand.hbm [shape: f32[4,512], index: 1, kind: output, shape index: {}]
  %s2 = sld [smem:[#allocation0]]
  $region18: #{tpu_custom_call.1} parent=0
    _
  %s4 = ssub.s32 1, %s2
  %s5 = scalar_select 0, %s4, %s2
  $region1: #{tpu_custom_call.1} parent=0
    #allocation2 [shape = 'u8[8192]{0}', space=vmem, size = 0x2000, scoped, tag = 'input window, operand 0, single buffered']
    #allocation3 [shape = 's32[1]{0}', space=sflag, size = 0x4, scoped, tag = 'scoped memory for tpu_custom_call.1']
    #allocation4 [shape = 's32[1]{0}', space=sflag, size = 0x4, scoped, tag = 'scoped memory for tpu_custom_call.1']
    #allocation5 [shape = 'u8[8192]{0}', space=vmem, size = 0x2000, scoped, tag = 'output window, operand 0, single buffered']
    %6 = vsyncpa [#allocation3], 0
    %7 = vsyncpa [#allocation4], 0
    // Predicated region
    $region2: #{tpu_custom_call.1} parent=1 // pred_check
      _
    $region3: #{tpu_custom_call.1} parent=1 // pred_check_branch
      %9 = sbr.rel (0) target = $region5
    $region4: #{tpu_custom_call.1} parent=1 // pred_region
      %s11 = ssub.s32 256, 256
      %12 = vsyncadd [#allocation3], %s11
      %s14 = sshll.u32 [#allocation2], 4
      %s15 = int_to_ptr.vmem [resolvable:$true] %s14
      %17 = dma.hbm_to_vmem [thread:$0]  %s0, 256, %s15, [#allocation3]
    $region5: #{tpu_custom_call.1} parent=1 // pred_fallthru
      _
    // Predicated region
    $region6: #{tpu_custom_call.1} parent=1 // pred_check
      _
    $region7: #{tpu_custom_call.1} parent=1 // pred_check_branch
      %19 = sbr.rel (0) target = $region9
    $region8: #{tpu_custom_call.1} parent=1 // pred_region
      %20 = dma.done [#allocation3], 256
    $region9: #{tpu_custom_call.1} parent=1 // pred_fallthru
      _
    %v21 = vld [vmem:[#allocation2] sm:$0xff]
    %v22 = vld [vmem:[#allocation2 + $0x8] sm:$0xff]
    %v25 = vcombine.high %v21, %v21
    %v26 = vcombine.high %v22, %v22
    %vm29 = vcmask 1043456
    %v30 = vsel %vm29, %v21, inf
    %v31 = vsel %vm29, %v25, inf
    %v32 = vsel %vm29, %v22, inf
    %v33 = vsel %vm29, %v26, inf
    %v34 = vmin.f32 %v30, %v31
    %v35 = vmin.f32 %v32, %v33
    %v36 = vmin.f32 %v34, %v35
    %37 = vmin.xlane.f32.xlu0 %v36
    %v38 = vpop.xlane.xlu0 %37
    %v39 = vrot.slane %v38, 4
    %v40 = vmin.f32 %v38, %v39
    %v41 = vrot.slane %v40, 2
    %v42 = vmin.f32 %v40, %v41
    %v43 = vrot.slane %v42, 1
    %v44 = vmin.f32 %v42, %v43
    %s45 = vtos %v44
    %s46 = ssub.f32 %s45, 1e-08
    %v47 = vsel %vm29, %v21, -inf
    %v48 = vsel %vm29, %v25, -inf
    %v49 = vsel %vm29, %v22, -inf
    %v50 = vsel %vm29, %v26, -inf
    %v51 = vmax.f32 %v47, %v48
    %v52 = vmax.f32 %v49, %v50
    %v53 = vmax.f32 %v51, %v52
    %54 = vmax.xlane.f32.xlu0 %v53
    %v55 = vpop.xlane.xlu0 %54
    %v56 = vrot.slane %v55, 4
    %v57 = vmax.f32 %v55, %v56
    %v58 = vrot.slane %v57, 2
    %v59 = vmax.f32 %v57, %v58
    %v60 = vrot.slane %v59, 1
    %v61 = vmax.f32 %v59, %v60
    %s62 = vtos %v61
    %s63 = sadd.f32 %s62, 1e-08
    %s64 = ssub.f32 %s63, %s46
    %v65 = vstv %s64
    %v66 = vrcp.pop %v65
    %s67 = vtos %v66
    %s68 = smul.f32 255.0, %s67
    %v69 = vrcp.pop 255.0
    %s70 = vtos %v69
    %s71 = smul.f32 %s64, %s70
    %v72 = vstv %s46
    %v73 = vsub.f32 %v21, %v72
    %v74 = vsub.f32 %v22, %v72
    %v75 = vstv %s68
    %v76 = vmul.f32 %v73, %v75
    %v77 = vmul.f32 %v74, %v75
    %v78 = vmax.f32 %v76, 0.0
    %v79 = vmax.f32 %v77, 0.0
    %v80 = vmin.f32 %v78, 255.0
    %v81 = vmin.f32 %v79, 255.0
    %v82 = vround.ne.pseudo %v80
    %v83 = vround.ne.pseudo %v81
    %v84 = vstv %s71
    %v85 = vmul.f32 %v82, %v84
    %v86 = vmul.f32 %v83, %v84
    %v87 = vadd.f32 %v85, %v72
    %v88 = vadd.f32 %v86, %v72
    %89 = vst [vmem:[#allocation5] sm:$0xff] %v87
    %90 = vst [vmem:[#allocation5 + $0x8] sm:$0xff] %v88
    // Predicated region
    $region10: #{tpu_custom_call.1} parent=1 // pred_check
      _
    $region11: #{tpu_custom_call.1} parent=1 // pred_check_branch
      %92 = sbr.rel (0) target = $region13
    $region12: #{tpu_custom_call.1} parent=1 // pred_region
      %s94 = ssub.s32 256, 256
      %95 = vsyncadd [#allocation4], %s94
      %s97 = sshll.u32 [#allocation5], 4
      %s98 = int_to_ptr.vmem [resolvable:$true] %s97
      %100 = dma.vmem_to_hbm [thread:$0]  %s98, 256, %s1, [#allocation4]
    $region13: #{tpu_custom_call.1} parent=1 // pred_fallthru
      _
    // Predicated region
    $region14: #{tpu_custom_call.1} parent=1 // pred_check
      _
    $region15: #{tpu_custom_call.1} parent=1 // pred_check_branch
      %102 = sbr.rel (0) target = $region17
    $region16: #{tpu_custom_call.1} parent=1 // pred_region
      %103 = dma.done [#allocation4], 256
    $region17: #{tpu_custom_call.1} parent=1 // pred_fallthru
      _
    %104 = vsyncpa [#allocation3], 1
    %105 = vsyncpa [#allocation4], 1

</llo_original>
